<compile_context>
chip_gen: v7x
topology: tpu7x:2x2x1
jax: 0.10.0
libtpu: 0.0.40
codegen_flags: <defaults>
</compile_context>

<pallas_src>
import functools

import jax
import jax.numpy as jnp
from jax.experimental import pallas as pl
from jax.experimental.pallas import tpu as pltpu


def _round_up(v, m):
    return (v + m - 1) // m * m


def _box_blur_kernel(a_ref, b_ref, o_ref, *, K):
    """a_ref: (TH, Wp)  current row strip of the padded image.
       b_ref: (TB, Wp)  first TB rows of the next strip (row halo, TB >= K-1).
       o_ref: (TH, TWo) output strip (lane-dense, TWo a multiple of 128).

    Normalized (K x K) box filter, computed separably in f32:
    K vertical (sublane-shift) adds, then K horizontal (lane-shift) adds."""
    TH, TWo = o_ref.shape

    # One load of the strip (+ halo); widen to f32 in-register only.
    stacked = jnp.concatenate([a_ref[...], b_ref[...]], axis=0).astype(jnp.float32)

    # Vertical K-tap sum (static sublane shifts of the loaded value).
    vsum = stacked[0:TH, :]
    for dy in range(1, K):
        vsum = vsum + stacked[dy:dy + TH, :]

    # Horizontal K-tap sum (static lane shifts of the loaded value).
    acc = vsum[:, 0:TWo]
    for dx in range(1, K):
        acc = acc + vsum[:, dx:dx + TWo]

    o_ref[...] = (acc * (1.0 / float(K * K))).astype(o_ref.dtype)


def smoothing_filter(x, radius=1, *, tile_rows=None):
    """Equivalent of SmoothingFilter(radius).forward(x) for a 2-D array x."""
    r = int(radius)
    K = 2 * r + 1
    H, W = x.shape

    if r == 0:
        return x  # kernel_size 1, normalized -> identity
    if r >= H or r >= W:
        raise ValueError("reflect padding requires radius < min(H, W)")

    TB = _round_up(2 * r, 8)                 # halo-view rows (>= K-1, sublane aligned)
    TWo = _round_up(W, 128)                  # lane-dense output width
    Wp = TWo + _round_up(2 * r, 128)         # input width: output width + halo slack

    if tile_rows is None:
        # ~1 MiB per input strip: (input + halo + output) double-buffered plus
        # f32 temporaries stay well under the default scoped-VMEM limits
        # (16 MiB on v5e, 32 MiB on v6e/v7x).
        budget = 1 << 20
        tile_rows = max(TB, min(512, (budget // (Wp * x.dtype.itemsize)) // TB * TB))
    TH = _round_up(min(int(tile_rows), _round_up(H, TB)), TB)
    TH = max(TH, TB)
    RB = TH // TB                            # halo-view block-index stride

    n_tiles = -(-H // TH)
    Hout = n_tiles * TH
    Hp = Hout + TB

    # Reflect-pad by r (matches kornia/torch 'reflect': mirror w/o edge repeat),
    # then zero-pad out to the aligned (Hp, Wp) canvas.  Both pads are pure
    # data movement and fuse into a single XLA pass.
    xr = jnp.pad(x, ((r, r), (r, r)), mode="reflect")
    xp = jnp.pad(xr, ((0, Hp - (H + 2 * r)), (0, Wp - (W + 2 * r))))

    kernel = functools.partial(_box_blur_kernel, K=K)

    out = pl.pallas_call(
        kernel,
        out_shape=jax.ShapeDtypeStruct((Hout, TWo), x.dtype),
        grid=(n_tiles,),
        in_specs=[
            pl.BlockSpec((TH, Wp), lambda i: (i, 0)),             # current strip
            pl.BlockSpec((TB, Wp), lambda i: ((i + 1) * RB, 0)),  # row halo (next strip head)
        ],
        out_specs=pl.BlockSpec((TH, TWo), lambda i: (i, 0)),
        compiler_params=pltpu.CompilerParams(
            dimension_semantics=("parallel",),
        ),
    )(xp, xp)

    return out[:H, :W]


def _reference_box_blur(x, radius=1):
    """Pure-JAX reference (same math) for a correctness check."""
    r = int(radius)
    K = 2 * r + 1
    H, W = x.shape
    xp = jnp.pad(x, ((r, r), (r, r)), mode="reflect")
    acc = jnp.zeros((H, W), jnp.float32)
    for dy in range(K):
        for dx in range(K):
            acc = acc + xp[dy:dy + H, dx:dx + W].astype(jnp.float32)
    return (acc / (K * K)).astype(x.dtype)


if __name__ == "__main__":
    key = jax.random.PRNGKey(0)
    # Ragged-on-purpose shape: exercises row tiling + halo across tile
    # boundaries, lane padding (W not a multiple of 128) and output slicing.
    H, W = 300, 200
    x = jax.random.normal(key, (H, W), dtype=jnp.float32)

    # radius=1 (module default), explicit small tile to exercise a multi-tile grid
    out = jax.block_until_ready(smoothing_filter(x, radius=1, tile_rows=64))
    ref = _reference_box_blur(x, radius=1)
    assert out.shape == (H, W)
    assert jnp.allclose(out, ref, atol=1e-5, rtol=1e-5)

    # radius=2 with auto tile-size selection
    out2 = jax.block_until_ready(smoothing_filter(x, radius=2))
    ref2 = _reference_box_blur(x, radius=2)
    assert jnp.allclose(out2, ref2, atol=1e-5, rtol=1e-5)

    # bf16 path: bf16 through the DMA, f32 accumulation in-register
    xb = x.astype(jnp.bfloat16)
    outb = jax.block_until_ready(smoothing_filter(xb, radius=1, tile_rows=64))
    refb = _reference_box_blur(xb, radius=1)
    assert jnp.allclose(outb.astype(jnp.float32), refb.astype(jnp.float32),
                        atol=5e-2, rtol=5e-2)

    print("KERNEL_OK")
</pallas_src>

<mosaic_0001>
module attributes {stable_mosaic.version = 11 : i64} {
  func.func @_box_blur_kernel(%arg0: i32, %arg1: memref<64x384xf32, #tpu.memory_space<vmem>>, %arg2: memref<8x384xf32, #tpu.memory_space<vmem>>, %arg3: memref<64x256xf32, #tpu.memory_space<vmem>>) attributes {dimension_semantics = [#tpu.dimension_semantics<parallel>], iteration_bounds = array<i64: 5>, scalar_prefetch = 0 : i64, scratch_operands = 0 : i64, tpu.core_type = #tpu.core_type<tc>, window_params = [{transform_indices = @transform_0, window_bounds = array<i64: 64, 384>}, {transform_indices = @transform_1, window_bounds = array<i64: 8, 384>}, {transform_indices = @transform_2, window_bounds = array<i64: 64, 256>}]} {
    %c0 = arith.constant 0 : index
    %c0_0 = arith.constant 0 : index
    %0 = vector.load %arg1[%c0, %c0_0] : memref<64x384xf32, #tpu.memory_space<vmem>>, vector<64x384xf32>
    %c0_1 = arith.constant 0 : index
    %c0_2 = arith.constant 0 : index
    %1 = vector.load %arg2[%c0_1, %c0_2] : memref<8x384xf32, #tpu.memory_space<vmem>>, vector<8x384xf32>
    %2 = tpu.concatenate %0, %1 in 0 : vector<64x384xf32>, vector<8x384xf32> -> vector<72x384xf32>
    %3 = vector.extract_strided_slice %2 {offsets = [0, 0], sizes = [64, 384], strides = [1, 1]} : vector<72x384xf32> to vector<64x384xf32>
    %4 = vector.extract_strided_slice %2 {offsets = [1, 0], sizes = [64, 384], strides = [1, 1]} : vector<72x384xf32> to vector<64x384xf32>
    %5 = arith.addf %3, %4 : vector<64x384xf32>
    %6 = vector.extract_strided_slice %2 {offsets = [2, 0], sizes = [64, 384], strides = [1, 1]} : vector<72x384xf32> to vector<64x384xf32>
    %7 = arith.addf %5, %6 : vector<64x384xf32>
    %8 = vector.extract_strided_slice %7 {offsets = [0, 0], sizes = [64, 256], strides = [1, 1]} : vector<64x384xf32> to vector<64x256xf32>
    %9 = vector.extract_strided_slice %7 {offsets = [0, 1], sizes = [64, 256], strides = [1, 1]} : vector<64x384xf32> to vector<64x256xf32>
    %10 = arith.addf %8, %9 : vector<64x256xf32>
    %11 = vector.extract_strided_slice %7 {offsets = [0, 2], sizes = [64, 256], strides = [1, 1]} : vector<64x384xf32> to vector<64x256xf32>
    %12 = arith.addf %10, %11 : vector<64x256xf32>
    %cst = arith.constant 0.111111112 : f32
    %13 = vector.broadcast %cst : f32 to vector<64x256xf32>
    %14 = arith.mulf %12, %13 : vector<64x256xf32>
    %c0_3 = arith.constant 0 : index
    %c0_4 = arith.constant 0 : index
    %15 = vector.load %arg3[%c0_3, %c0_4] : memref<64x256xf32, #tpu.memory_space<vmem>>, vector<64x256xf32>
    tpu.vector_store %arg3[%c0_3, %c0_4], %14 {strides = array<i32>} : memref<64x256xf32, #tpu.memory_space<vmem>>, vector<64x256xf32>,
    return
  }
  func.func @transform_0(%arg0: i32) -> (i32, i32) {
    %c0_i32 = arith.constant 0 : i32
    %c0_i32_0 = arith.constant 0 : i32
    return %arg0, %c0_i32 : i32, i32
  }
  func.func @transform_1(%arg0: i32) -> (i32, i32) {
    %c1_i32 = arith.constant 1 : i32
    %0 = arith.addi %arg0, %c1_i32 : i32
    %c8_i32 = arith.constant 8 : i32
    %1 = arith.muli %0, %c8_i32 : i32
    %c0_i32 = arith.constant 0 : i32
    %c0_i32_0 = arith.constant 0 : i32
    return %1, %c0_i32 : i32, i32
  }
  func.func @transform_2(%arg0: i32) -> (i32, i32) {
    %c0_i32 = arith.constant 0 : i32
    %c0_i32_0 = arith.constant 0 : i32
    return %arg0, %c0_i32 : i32, i32
  }
}

</mosaic_0001>

<llo_original>
// kernel: tpu_custom_call.1
$region0: #{tpu_custom_call.1}
  #allocation0 [shape = 'u32[]', space=smem, size = 0x4, offset = 0x4, fixed_abs, tag = 'smem constant byte address 0x4 - core index']
  #allocation1 [shape = 'u32[144,128]{1,0:T(1,128)}', space=vmem, size = 0x12000, scoped, tag = 'internal scratch']
  %s0 = inlined_call_operand.hbm [shape: f32[328,384], index: 0, kind: input, shape index: {}]
  %s1 = inlined_call_operand.hbm [shape: f32[328,384], index: 1, kind: input, shape index: {}]
  %s2 = inlined_call_operand.hbm [shape: f32[320,256], index: 2, kind: output, shape index: {}]
  %s3 = sld [smem:[#allocation0]]
  $region49: #{tpu_custom_call.1} parent=0
    _
  %s5 = ssub.s32 1, %s3
  %s6 = scalar_select 0, %s5, %s3
  $region1: #{tpu_custom_call.1} parent=0
    #allocation2 [shape = 'u8[196608]{0}', space=vmem, size = 0x30000, scoped, tag = 'input window, operand 0']
    #allocation3 [shape = 's32[2]{0}', space=sflag, size = 0x8, scoped, tag = 'scoped memory for tpu_custom_call.1']
    #allocation4 [shape = 's32[2]{0}', space=sflag, size = 0x8, scoped, tag = 'scoped memory for tpu_custom_call.1']
    #allocation5 [shape = 'u8[24576]{0}', space=vmem, size = 0x6000, scoped, tag = 'input window, operand 1']
    #allocation6 [shape = 's32[2]{0}', space=sflag, size = 0x8, scoped, tag = 'scoped memory for tpu_custom_call.1']
    #allocation7 [shape = 'u8[131072]{0}', space=vmem, size = 0x20000, scoped, tag = 'output window, operand 0']
    %7 = vsyncpa [#allocation3], 0
    %s8 = scalar_lea.sflag [#allocation3], 1
    %9 = vsyncpa %s8, 0
    %10 = vsyncpa [#allocation6], 0
    %s11 = scalar_lea.sflag [#allocation6], 1
    %12 = vsyncpa %s11, 0
    %13 = vsyncpa [#allocation4], 0
    %s14 = scalar_lea.sflag [#allocation4], 1
    %15 = vsyncpa %s14, 0
    loop: start=0, step=1, limit=7
    $region2: #{tpu_custom_call.1} parent=1 // loop_pre_header
      _
    $region3: #{tpu_custom_call.1} parent=1 // loop_header
      %s17 = sphi 0, %s21
      %p18 = scmp.ge.s32.totalorder %s17, 7
      %s27 = sphi 0, %s29
      %s30 = sphi 0, %s27
      %s31 = sphi 0, %s30
      %s47 = sphi 0, %s31
      %s57 = sphi 0, %s59
      %s60 = sphi 0, %s57
      %s61 = sphi 0, %s60
      %s77 = sphi 0, %s61
      %s83 = sphi 0, %s85
      %s86 = sphi 0, %s83
      %s87 = sphi 0, %s86
      %s103 = sphi 0, %s87
    $region4: #{tpu_custom_call.1} parent=1 // loop_header_branch
      %20 = sbr.rel (%p18) target = $region8
    $region5: #{tpu_custom_call.1} parent=1 // loop_body
      %s22 = ssub.s32 %s17, 1
      %s23 = ssub.s32 %s17, 2
      %s24 = sadd.s32 %s17, 1
      %s25 = ssub.s32 %s17, %s24
      %p26 = scmp.eq.s32.totalorder %s25, 0
      %s28 = sadd.s32 %s27, 1
      %s29 = scalar_select %p26, %s27, %s28
      %p32 = pneg %p26
      %p33 = scmp.eq.s32.totalorder %s17, 4
      %p34 = por %p32, %p33
      %p35 = scmp.ne.s32.totalorder %s27, %s30
      %p36 = scmp.eq.s32.totalorder %s17, 0
      %p37 = por %p35, %p36
      %p38 = scmp.ne.s32.totalorder %s27, %s30
      %p39 = scmp.eq.s32.totalorder %s22, 4
      %p40 = por %p38, %p39
      %p41 = scmp.ne.s32.totalorder %s30, %s31
      %p42 = scmp.eq.s32.totalorder %s22, 0
      %p43 = por %p41, %p42
      %p44 = scmp.ne.s32.totalorder %s30, %s31
      %p45 = scmp.eq.s32.totalorder %s23, 4
      %p46 = por %p44, %p45
      %p48 = scmp.ne.s32.totalorder %s31, %s47
      %p49 = scmp.eq.s32.totalorder %s23, 0
      %p50 = por %p48, %p49
      %s51 = sadd.s32 %s17, 1
      %s52 = smul.u32 %s51, 8
      %s53 = sadd.s32 %s24, 1
      %s54 = smul.u32 %s53, 8
      %s55 = ssub.s32 %s52, %s54
      %p56 = scmp.eq.s32.totalorder %s55, 0
      %s58 = sadd.s32 %s57, 1
      %s59 = scalar_select %p56, %s57, %s58
      %p62 = pneg %p56
      %p63 = scmp.eq.s32.totalorder %s17, 4
      %p64 = por %p62, %p63
      %p65 = scmp.ne.s32.totalorder %s57, %s60
      %p66 = scmp.eq.s32.totalorder %s17, 0
      %p67 = por %p65, %p66
      %p68 = scmp.ne.s32.totalorder %s57, %s60
      %p69 = scmp.eq.s32.totalorder %s22, 4
      %p70 = por %p68, %p69
      %p71 = scmp.ne.s32.totalorder %s60, %s61
      %p72 = scmp.eq.s32.totalorder %s22, 0
      %p73 = por %p71, %p72
      %p74 = scmp.ne.s32.totalorder %s60, %s61
      %p75 = scmp.eq.s32.totalorder %s23, 4
      %p76 = por %p74, %p75
      %p78 = scmp.ne.s32.totalorder %s61, %s77
      %p79 = scmp.eq.s32.totalorder %s23, 0
      %p80 = por %p78, %p79
      %s81 = ssub.s32 %s17, %s24
      %p82 = scmp.eq.s32.totalorder %s81, 0
      %s84 = sadd.s32 %s83, 1
      %s85 = scalar_select %p82, %s83, %s84
      %p88 = pneg %p82
      %p89 = scmp.eq.s32.totalorder %s17, 4
      %p90 = por %p88, %p89
      %p91 = scmp.ne.s32.totalorder %s83, %s86
      %p92 = scmp.eq.s32.totalorder %s17, 0
      %p93 = por %p91, %p92
      %p94 = scmp.ne.s32.totalorder %s83, %s86
      %p95 = scmp.eq.s32.totalorder %s22, 4
      %p96 = por %p94, %p95
      %p97 = scmp.ne.s32.totalorder %s86, %s87
      %p98 = scmp.eq.s32.totalorder %s22, 0
      %p99 = por %p97, %p98
      %p100 = scmp.ne.s32.totalorder %s86, %s87
      %p101 = scmp.eq.s32.totalorder %s23, 4
      %p102 = por %p100, %p101
      %p104 = scmp.ne.s32.totalorder %s87, %s103
      %p105 = scmp.eq.s32.totalorder %s23, 0
      %p106 = por %p104, %p105
      %p107 = scmp.le.s32.totalorder 1, %s17
      %p108 = scmp.lt.s32.totalorder %s17, 6
      %p109 = pnand %p107, %p108
      %p110 = pneg %p109
      // Predicated region
      $region9: #{tpu_custom_call.1} parent=5 // pred_check
        _
      $region10: #{tpu_custom_call.1} parent=5 // pred_check_branch
        %112 = sbr.rel (%p109) target = $region12
      $region11: #{tpu_custom_call.1} parent=5 // pred_region
        %s113 = ssub.s32 %s17, 1
      $region12: #{tpu_custom_call.1} parent=5 // pred_fallthru
        _
      %p114 = scmp.lt.s32.totalorder %s17, 5
      // Predicated region
      $region13: #{tpu_custom_call.1} parent=5 // pred_check
        %p115 = pneg %p114
      $region14: #{tpu_custom_call.1} parent=5 // pred_check_branch
        %117 = sbr.rel (%p115) target = $region16
      $region15: #{tpu_custom_call.1} parent=5 // pred_region
        // Predicated region
        $region17: #{tpu_custom_call.1} parent=15 // pred_check
          %p118 = pneg %p37
        $region18: #{tpu_custom_call.1} parent=15 // pred_check_branch
          %120 = sbr.rel (%p118) target = $region20
        $region19: #{tpu_custom_call.1} parent=15 // pred_region
          %s121 = sand.u32 %s27, 1
          %s122 = scalar_lea.sflag [#allocation3], %s121
          %s123 = sand.u32 %s27, 1
          %s124 = smul.addr %s123, 192
          %s125 = scalar_lea.vmem [#allocation2], %s124
          %s126 = smul.u32 8, %s17
          %s127 = ssub.s32 41, %s126
          %p128 = scmp.lt.s32.totalorder %s127, 8
          %s129 = scalar_select %p128, %s127, 8
          %s130 = smul.u32 128, %s129
          %s131 = smul.u32 %s130, 3
          %s133 = ssub.s32 3072, %s131
          %134 = vsyncadd %s122, %s133
          %p135 = scmp.ne.s32.totalorder 0, %s131
          %s136 = smul.addr %s126, 3
          %s137 = smul.addr %s136, 128
          %s138 = scalar_lea.hbm %s0, %s137
          %s139 = smul.u32 24, %s129
          %s140 = sshll.u32 %s125, 4
          %s141 = int_to_ptr.vmem [resolvable:$true] %s140
          %s142 = sshll.u32 %s139, 4
          %146 = dma.hbm_to_vmem [thread:$0]  (%p135), %s138, %s142, %s141, %s122, 384, 384, 24
        $region20: #{tpu_custom_call.1} parent=15 // pred_fallthru
          _
        // Predicated region
        $region21: #{tpu_custom_call.1} parent=15 // pred_check
          %p147 = pneg %p67
        $region22: #{tpu_custom_call.1} parent=15 // pred_check_branch
          %149 = sbr.rel (%p147) target = $region24
        $region23: #{tpu_custom_call.1} parent=15 // pred_region
          %s150 = sand.u32 %s57, 1
          %s151 = scalar_lea.sflag [#allocation6], %s150
          %s152 = sand.u32 %s57, 1
          %s153 = smul.addr %s152, 24
          %s154 = scalar_lea.vmem [#allocation5], %s153
          %s155 = sadd.s32 %s17, 1
          %s156 = smul.u32 %s155, 8
          %s158 = ssub.s32 384, 384
          %159 = vsyncadd %s151, %s158
          %s160 = smul.addr %s156, 3
          %s161 = smul.addr %s160, 128
          %s162 = scalar_lea.hbm %s1, %s161
          %s164 = sshll.u32 %s154, 4
          %s165 = int_to_ptr.vmem [resolvable:$true] %s164
          %167 = dma.hbm_to_vmem [thread:$0]  %s162, 384, %s165, %s151
        $region24: #{tpu_custom_call.1} parent=15 // pred_fallthru
          _
      $region16: #{tpu_custom_call.1} parent=5 // pred_fallthru
        _
      %p168 = scmp.le.s32.totalorder 1, %s17
      %p169 = scmp.lt.s32.totalorder %s17, 6
      %p170 = pnand %p168, %p169
      %p171 = pneg %p170
      // Predicated region
      $region25: #{tpu_custom_call.1} parent=5 // pred_check
        _
      $region26: #{tpu_custom_call.1} parent=5 // pred_check_branch
        %173 = sbr.rel (%p170) target = $region28
      $region27: #{tpu_custom_call.1} parent=5 // pred_region
        %s174 = ssub.s32 %s17, 1
        %s175 = sand.u32 %s30, 1
        %s176 = scalar_lea.sflag [#allocation3], %s175
        %s177 = sand.u32 %s30, 1
        %s178 = smul.addr %s177, 192
        %s179 = scalar_lea.vmem [#allocation2], %s178
        // Predicated region
        $region29: #{tpu_custom_call.1} parent=27 // pred_check
          %p180 = pneg %p43
        $region30: #{tpu_custom_call.1} parent=27 // pred_check_branch
          %182 = sbr.rel (%p180) target = $region32
        $region31: #{tpu_custom_call.1} parent=27 // pred_region
          %183 = dma.done %s176, 3072
        $region32: #{tpu_custom_call.1} parent=27 // pred_fallthru
          _
        %s184 = sand.u32 %s60, 1
        %s185 = scalar_lea.sflag [#allocation6], %s184
        %s186 = sand.u32 %s60, 1
        %s187 = smul.addr %s186, 24
        %s188 = scalar_lea.vmem [#allocation5], %s187
        // Predicated region
        $region33: #{tpu_custom_call.1} parent=27 // pred_check
          %p189 = pneg %p73
        $region34: #{tpu_custom_call.1} parent=27 // pred_check_branch
          %191 = sbr.rel (%p189) target = $region36
        $region35: #{tpu_custom_call.1} parent=27 // pred_region
          %192 = dma.done %s185, 384
        $region36: #{tpu_custom_call.1} parent=27 // pred_fallthru
          _
        %s193 = sand.u32 %s30, 1
        %s194 = scalar_lea.sflag [#allocation3], %s193
        %s195 = sand.u32 %s30, 1
        %s196 = smul.addr %s195, 192
        %s197 = scalar_lea.vmem [#allocation2], %s196
        %p198 = pneg %p43
        %p199 = pneg %p40
        %s200 = sand.u32 %s60, 1
        %s201 = scalar_lea.sflag [#allocation6], %s200
        %s202 = sand.u32 %s60, 1
        %s203 = smul.addr %s202, 24
        %s204 = scalar_lea.vmem [#allocation5], %s203
        %p205 = pneg %p73
        %p206 = pneg %p70
        %p207 = pneg %p99
        %p208 = pneg %p96
        %s209 = sand.u32 %s86, 1
        %s210 = scalar_lea.sflag [#allocation4], %s209
        %s211 = sand.u32 %s86, 1
        %s212 = smul.addr %s211, 128
        %s213 = scalar_lea.vmem [#allocation7], %s212
        %s214 = smul.u32 8, %s22
        %s215 = ssub.s32 41, %s214
        %p216 = scmp.lt.s32.totalorder %s215, 8
        %s217 = scalar_select %p216, %s215, 8
        %s218 = smul.u32 128, %s217
        %s219 = smul.u32 %s218, 3
        %s220 = sadd.s32 %s22, 1
        %s221 = smul.u32 %s220, 8
        %s222 = smul.u32 8, %s22
        %v223 = vld [vmem:[%s179] sm:$0xff]
        %v224 = vld [vmem:[%s179 + $0x8] sm:$0xff]
        %v225 = vld [vmem:[%s179 + $0x10] sm:$0xff]
        %v226 = vld [vmem:[%s179 + $0x18] sm:$0xff]
        %v227 = vld [vmem:[%s179 + $0x20] sm:$0xff]
        %v228 = vld [vmem:[%s179 + $0x28] sm:$0xff]
        %v229 = vld [vmem:[%s179 + $0x30] sm:$0xff]
        %v230 = vld [vmem:[%s179 + $0x38] sm:$0xff]
        %v231 = vld [vmem:[%s179 + $0x40] sm:$0xff]
        %v232 = vld [vmem:[%s179 + $0x48] sm:$0xff]
        %v233 = vld [vmem:[%s179 + $0x50] sm:$0xff]
        %v234 = vld [vmem:[%s179 + $0x58] sm:$0xff]
        %v235 = vld [vmem:[%s179 + $0x60] sm:$0xff]
        %v236 = vld [vmem:[%s179 + $0x68] sm:$0xff]
        %v237 = vld [vmem:[%s179 + $0x70] sm:$0xff]
        %v238 = vld [vmem:[%s179 + $0x78] sm:$0xff]
        %v239 = vld [vmem:[%s179 + $0x80] sm:$0xff]
        %v240 = vld [vmem:[%s179 + $0x88] sm:$0xff]
        %v241 = vld [vmem:[%s179 + $0x90] sm:$0xff]
        %v242 = vld [vmem:[%s179 + $0x98] sm:$0xff]
        %v243 = vld [vmem:[%s179 + $0xa0] sm:$0xff]
        %v244 = vld [vmem:[%s179 + $0xa8] sm:$0xff]
        %v245 = vld [vmem:[%s179 + $0xb0] sm:$0xff]
        %v246 = vld [vmem:[%s179 + $0xb8] sm:$0xff]
        %v247 = vld [vmem:[%s188] sm:$0xff]
        %v248 = vld [vmem:[%s188 + $0x8] sm:$0xff]
        %v249 = vld [vmem:[%s188 + $0x10] sm:$0xff]
        %vm277 = vcmask 1046528
        %v278 = vrot.slane %v223, 1
        %v279 = vrot.slane %v226, 1
        %v280 = vsel %vm277, %v278, %v279
        %v281 = vrot.slane %v224, 1
        %v282 = vrot.slane %v227, 1
        %v283 = vsel %vm277, %v281, %v282
        %v284 = vrot.slane %v225, 1
        %v285 = vrot.slane %v228, 1
        %v286 = vsel %vm277, %v284, %v285
        %v287 = vrot.slane %v229, 1
        %v288 = vsel %vm277, %v279, %v287
        %v289 = vrot.slane %v230, 1
        %v290 = vsel %vm277, %v282, %v289
        %v291 = vrot.slane %v231, 1
        %v292 = vsel %vm277, %v285, %v291
        %v293 = vrot.slane %v232, 1
        %v294 = vsel %vm277, %v287, %v293
        %v295 = vrot.slane %v233, 1
        %v296 = vsel %vm277, %v289, %v295
        %v297 = vrot.slane %v234, 1
        %v298 = vsel %vm277, %v291, %v297
        %v299 = vrot.slane %v235, 1
        %v300 = vsel %vm277, %v293, %v299
        %v301 = vrot.slane %v236, 1
        %v302 = vsel %vm277, %v295, %v301
        %v303 = vrot.slane %v237, 1
        %v304 = vsel %vm277, %v297, %v303
        %v305 = vrot.slane %v238, 1
        %v306 = vsel %vm277, %v299, %v305
        %v307 = vrot.slane %v239, 1
        %v308 = vsel %vm277, %v301, %v307
        %v309 = vrot.slane %v240, 1
        %v310 = vsel %vm277, %v303, %v309
        %v311 = vrot.slane %v241, 1
        %v312 = vsel %vm277, %v305, %v311
        %v313 = vrot.slane %v242, 1
        %v314 = vsel %vm277, %v307, %v313
        %v315 = vrot.slane %v243, 1
        %v316 = vsel %vm277, %v309, %v315
        %v317 = vrot.slane %v244, 1
        %v318 = vsel %vm277, %v311, %v317
        %v319 = vrot.slane %v245, 1
        %v320 = vsel %vm277, %v313, %v319
        %v321 = vrot.slane %v246, 1
        %v322 = vsel %vm277, %v315, %v321
        %v323 = vrot.slane %v247, 1
        %v324 = vsel %vm277, %v317, %v323
        %v325 = vrot.slane %v248, 1
        %v326 = vsel %vm277, %v319, %v325
        %v327 = vrot.slane %v249, 1
        %v328 = vsel %vm277, %v321, %v327
        %v353 = vadd.f32 %v223, %v280
        %v354 = vadd.f32 %v224, %v283
        %v355 = vadd.f32 %v225, %v286
        %v356 = vadd.f32 %v226, %v288
        %v357 = vadd.f32 %v227, %v290
        %v358 = vadd.f32 %v228, %v292
        %v359 = vadd.f32 %v229, %v294
        %v360 = vadd.f32 %v230, %v296
        %v361 = vadd.f32 %v231, %v298
        %v362 = vadd.f32 %v232, %v300
        %v363 = vadd.f32 %v233, %v302
        %v364 = vadd.f32 %v234, %v304
        %v365 = vadd.f32 %v235, %v306
        %v366 = vadd.f32 %v236, %v308
        %v367 = vadd.f32 %v237, %v310
        %v368 = vadd.f32 %v238, %v312
        %v369 = vadd.f32 %v239, %v314
        %v370 = vadd.f32 %v240, %v316
        %v371 = vadd.f32 %v241, %v318
        %v372 = vadd.f32 %v242, %v320
        %v373 = vadd.f32 %v243, %v322
        %v374 = vadd.f32 %v244, %v324
        %v375 = vadd.f32 %v245, %v326
        %v376 = vadd.f32 %v246, %v328
        %vm377 = vcmask 1045504
        %v378 = vrot.slane %v223, 2
        %v379 = vrot.slane %v226, 2
        %v380 = vsel %vm377, %v378, %v379
        %v381 = vrot.slane %v224, 2
        %v382 = vrot.slane %v227, 2
        %v383 = vsel %vm377, %v381, %v382
        %v384 = vrot.slane %v225, 2
        %v385 = vrot.slane %v228, 2
        %v386 = vsel %vm377, %v384, %v385
        %v387 = vrot.slane %v229, 2
        %v388 = vsel %vm377, %v379, %v387
        %v389 = vrot.slane %v230, 2
        %v390 = vsel %vm377, %v382, %v389
        %v391 = vrot.slane %v231, 2
        %v392 = vsel %vm377, %v385, %v391
        %v393 = vrot.slane %v232, 2
        %v394 = vsel %vm377, %v387, %v393
        %v395 = vrot.slane %v233, 2
        %v396 = vsel %vm377, %v389, %v395
        %v397 = vrot.slane %v234, 2
        %v398 = vsel %vm377, %v391, %v397
        %v399 = vrot.slane %v235, 2
        %v400 = vsel %vm377, %v393, %v399
        %v401 = vrot.slane %v236, 2
        %v402 = vsel %vm377, %v395, %v401
        %v403 = vrot.slane %v237, 2
        %v404 = vsel %vm377, %v397, %v403
        %v405 = vrot.slane %v238, 2
        %v406 = vsel %vm377, %v399, %v405
        %v407 = vrot.slane %v239, 2
        %v408 = vsel %vm377, %v401, %v407
        %v409 = vrot.slane %v240, 2
        %v410 = vsel %vm377, %v403, %v409
        %v411 = vrot.slane %v241, 2
        %v412 = vsel %vm377, %v405, %v411
        %v413 = vrot.slane %v242, 2
        %v414 = vsel %vm377, %v407, %v413
        %v415 = vrot.slane %v243, 2
        %v416 = vsel %vm377, %v409, %v415
        %v417 = vrot.slane %v244, 2
        %v418 = vsel %vm377, %v411, %v417
        %v419 = vrot.slane %v245, 2
        %v420 = vsel %vm377, %v413, %v419
        %v421 = vrot.slane %v246, 2
        %v422 = vsel %vm377, %v415, %v421
        %v423 = vrot.slane %v247, 2
        %v424 = vsel %vm377, %v417, %v423
        %v425 = vrot.slane %v248, 2
        %v426 = vsel %vm377, %v419, %v425
        %v427 = vrot.slane %v249, 2
        %v428 = vsel %vm377, %v421, %v427
        %v453 = vadd.f32 %v353, %v380
        %v454 = vadd.f32 %v354, %v383
        %v455 = vadd.f32 %v355, %v386
        %v456 = vadd.f32 %v356, %v388
        %v457 = vadd.f32 %v357, %v390
        %v458 = vadd.f32 %v358, %v392
        %v459 = vadd.f32 %v359, %v394
        %v460 = vadd.f32 %v360, %v396
        %v461 = vadd.f32 %v361, %v398
        %v462 = vadd.f32 %v362, %v400
        %v463 = vadd.f32 %v363, %v402
        %v464 = vadd.f32 %v364, %v404
        %v465 = vadd.f32 %v365, %v406
        %v466 = vadd.f32 %v366, %v408
        %v467 = vadd.f32 %v367, %v410
        %v468 = vadd.f32 %v368, %v412
        %v469 = vadd.f32 %v369, %v414
        %v470 = vadd.f32 %v370, %v416
        %v471 = vadd.f32 %v371, %v418
        %v472 = vadd.f32 %v372, %v420
        %v473 = vadd.f32 %v373, %v422
        %v474 = vadd.f32 %v374, %v424
        %v475 = vadd.f32 %v375, %v426
        %v476 = vadd.f32 %v376, %v428
        %501 = vrot.lane.b32.xlu0 %v453, 127
        %v502 = vpop.permute.xlu0 %501
        %503 = vrot.lane.b32.xlu0 %v454, 127
        %v504 = vpop.permute.xlu0 %503
        %505 = vrot.lane.b32.xlu0 %v455, 127
        %v506 = vpop.permute.xlu0 %505
        %507 = vrot.lane.b32.xlu0 %v456, 127
        %v508 = vpop.permute.xlu0 %507
        %509 = vrot.lane.b32.xlu0 %v457, 127
        %v510 = vpop.permute.xlu0 %509
        %511 = vrot.lane.b32.xlu0 %v458, 127
        %v512 = vpop.permute.xlu0 %511
        %513 = vrot.lane.b32.xlu0 %v459, 127
        %v514 = vpop.permute.xlu0 %513
        %515 = vrot.lane.b32.xlu0 %v460, 127
        %v516 = vpop.permute.xlu0 %515
        %517 = vrot.lane.b32.xlu0 %v461, 127
        %v518 = vpop.permute.xlu0 %517
        %519 = vrot.lane.b32.xlu0 %v462, 127
        %v520 = vpop.permute.xlu0 %519
        %521 = vrot.lane.b32.xlu0 %v463, 127
        %v522 = vpop.permute.xlu0 %521
        %523 = vrot.lane.b32.xlu0 %v464, 127
        %v524 = vpop.permute.xlu0 %523
        %525 = vrot.lane.b32.xlu0 %v465, 127
        %v526 = vpop.permute.xlu0 %525
        %527 = vrot.lane.b32.xlu0 %v466, 127
        %v528 = vpop.permute.xlu0 %527
        %529 = vrot.lane.b32.xlu0 %v467, 127
        %v530 = vpop.permute.xlu0 %529
        %531 = vrot.lane.b32.xlu0 %v468, 127
        %v532 = vpop.permute.xlu0 %531
        %533 = vrot.lane.b32.xlu0 %v469, 127
        %v534 = vpop.permute.xlu0 %533
        %535 = vrot.lane.b32.xlu0 %v470, 127
        %v536 = vpop.permute.xlu0 %535
        %537 = vrot.lane.b32.xlu0 %v471, 127
        %v538 = vpop.permute.xlu0 %537
        %539 = vrot.lane.b32.xlu0 %v472, 127
        %v540 = vpop.permute.xlu0 %539
        %541 = vrot.lane.b32.xlu0 %v473, 127
        %v542 = vpop.permute.xlu0 %541
        %543 = vrot.lane.b32.xlu0 %v474, 127
        %v544 = vpop.permute.xlu0 %543
        %545 = vrot.lane.b32.xlu0 %v475, 127
        %v546 = vpop.permute.xlu0 %545
        %547 = vrot.lane.b32.xlu0 %v476, 127
        %v548 = vpop.permute.xlu0 %547
        %vm549 = vcmask 1039360
        %v550 = vsel %vm549, %v502, %v504
        %v551 = vsel %vm549, %v504, %v506
        %v552 = vsel %vm549, %v508, %v510
        %v553 = vsel %vm549, %v510, %v512
        %v554 = vsel %vm549, %v514, %v516
        %v555 = vsel %vm549, %v516, %v518
        %v556 = vsel %vm549, %v520, %v522
        %v557 = vsel %vm549, %v522, %v524
        %v558 = vsel %vm549, %v526, %v528
        %v559 = vsel %vm549, %v528, %v530
        %v560 = vsel %vm549, %v532, %v534
        %v561 = vsel %vm549, %v534, %v536
        %v562 = vsel %vm549, %v538, %v540
        %v563 = vsel %vm549, %v540, %v542
        %v564 = vsel %vm549, %v544, %v546
        %v565 = vsel %vm549, %v546, %v548
        %v582 = vadd.f32 %v453, %v550
        %v583 = vadd.f32 %v454, %v551
        %v584 = vadd.f32 %v456, %v552
        %v585 = vadd.f32 %v457, %v553
        %v586 = vadd.f32 %v459, %v554
        %v587 = vadd.f32 %v460, %v555
        %v588 = vadd.f32 %v462, %v556
        %v589 = vadd.f32 %v463, %v557
        %v590 = vadd.f32 %v465, %v558
        %v591 = vadd.f32 %v466, %v559
        %v592 = vadd.f32 %v468, %v560
        %v593 = vadd.f32 %v469, %v561
        %v594 = vadd.f32 %v471, %v562
        %v595 = vadd.f32 %v472, %v563
        %v596 = vadd.f32 %v474, %v564
        %v597 = vadd.f32 %v475, %v565
        %598 = vrot.lane.b32.xlu0 %v453, 126
        %v599 = vpop.permute.xlu0 %598
        %600 = vrot.lane.b32.xlu0 %v454, 126
        %v601 = vpop.permute.xlu0 %600
        %602 = vrot.lane.b32.xlu0 %v455, 126
        %v603 = vpop.permute.xlu0 %602
        %604 = vrot.lane.b32.xlu0 %v456, 126
        %v605 = vpop.permute.xlu0 %604
        %606 = vrot.lane.b32.xlu0 %v457, 126
        %v607 = vpop.permute.xlu0 %606
        %608 = vrot.lane.b32.xlu0 %v458, 126
        %v609 = vpop.permute.xlu0 %608
        %610 = vrot.lane.b32.xlu0 %v459, 126
        %v611 = vpop.permute.xlu0 %610
        %612 = vrot.lane.b32.xlu0 %v460, 126
        %v613 = vpop.permute.xlu0 %612
        %614 = vrot.lane.b32.xlu0 %v461, 126
        %v615 = vpop.permute.xlu0 %614
        %616 = vrot.lane.b32.xlu0 %v462, 126
        %v617 = vpop.permute.xlu0 %616
        %618 = vrot.lane.b32.xlu0 %v463, 126
        %v619 = vpop.permute.xlu0 %618
        %620 = vrot.lane.b32.xlu0 %v464, 126
        %v621 = vpop.permute.xlu0 %620
        %622 = vrot.lane.b32.xlu0 %v465, 126
        %v623 = vpop.permute.xlu0 %622
        %624 = vrot.lane.b32.xlu0 %v466, 126
        %v625 = vpop.permute.xlu0 %624
        %626 = vrot.lane.b32.xlu0 %v467, 126
        %v627 = vpop.permute.xlu0 %626
        %628 = vrot.lane.b32.xlu0 %v468, 126
        %v629 = vpop.permute.xlu0 %628
        %630 = vrot.lane.b32.xlu0 %v469, 126
        %v631 = vpop.permute.xlu0 %630
        %632 = vrot.lane.b32.xlu0 %v470, 126
        %v633 = vpop.permute.xlu0 %632
        %634 = vrot.lane.b32.xlu0 %v471, 126
        %v635 = vpop.permute.xlu0 %634
        %636 = vrot.lane.b32.xlu0 %v472, 126
        %v637 = vpop.permute.xlu0 %636
        %638 = vrot.lane.b32.xlu0 %v473, 126
        %v639 = vpop.permute.xlu0 %638
        %640 = vrot.lane.b32.xlu0 %v474, 126
        %v641 = vpop.permute.xlu0 %640
        %642 = vrot.lane.b32.xlu0 %v475, 126
        %v643 = vpop.permute.xlu0 %642
        %644 = vrot.lane.b32.xlu0 %v476, 126
        %v645 = vpop.permute.xlu0 %644
        %vm646 = vcmask 1031168
        %v647 = vsel %vm646, %v599, %v601
        %v648 = vsel %vm646, %v601, %v603
        %v649 = vsel %vm646, %v605, %v607
        %v650 = vsel %vm646, %v607, %v609
        %v651 = vsel %vm646, %v611, %v613
        %v652 = vsel %vm646, %v613, %v615
        %v653 = vsel %vm646, %v617, %v619
        %v654 = vsel %vm646, %v619, %v621
        %v655 = vsel %vm646, %v623, %v625
        %v656 = vsel %vm646, %v625, %v627
        %v657 = vsel %vm646, %v629, %v631
        %v658 = vsel %vm646, %v631, %v633
        %v659 = vsel %vm646, %v635, %v637
        %v660 = vsel %vm646, %v637, %v639
        %v661 = vsel %vm646, %v641, %v643
        %v662 = vsel %vm646, %v643, %v645
        %v679 = vadd.f32 %v582, %v647
        %v680 = vadd.f32 %v583, %v648
        %v681 = vadd.f32 %v584, %v649
        %v682 = vadd.f32 %v585, %v650
        %v683 = vadd.f32 %v586, %v651
        %v684 = vadd.f32 %v587, %v652
        %v685 = vadd.f32 %v588, %v653
        %v686 = vadd.f32 %v589, %v654
        %v687 = vadd.f32 %v590, %v655
        %v688 = vadd.f32 %v591, %v656
        %v689 = vadd.f32 %v592, %v657
        %v690 = vadd.f32 %v593, %v658
        %v691 = vadd.f32 %v594, %v659
        %v692 = vadd.f32 %v595, %v660
        %v693 = vadd.f32 %v596, %v661
        %v694 = vadd.f32 %v597, %v662
        %v695 = vmul.f32 %v679, 0.11111111
        %v696 = vmul.f32 %v680, 0.11111111
        %v697 = vmul.f32 %v681, 0.11111111
        %v698 = vmul.f32 %v682, 0.11111111
        %v699 = vmul.f32 %v683, 0.11111111
        %v700 = vmul.f32 %v684, 0.11111111
        %v701 = vmul.f32 %v685, 0.11111111
        %v702 = vmul.f32 %v686, 0.11111111
        %v703 = vmul.f32 %v687, 0.11111111
        %v704 = vmul.f32 %v688, 0.11111111
        %v705 = vmul.f32 %v689, 0.11111111
        %v706 = vmul.f32 %v690, 0.11111111
        %v707 = vmul.f32 %v691, 0.11111111
        %v708 = vmul.f32 %v692, 0.11111111
        %v709 = vmul.f32 %v693, 0.11111111
        %v710 = vmul.f32 %v694, 0.11111111
        %711 = vst [vmem:[%s213] sm:$0xff] %v695
        %712 = vst [vmem:[%s213 + $0x8] sm:$0xff] %v696
        %713 = vst [vmem:[%s213 + $0x10] sm:$0xff] %v697
        %714 = vst [vmem:[%s213 + $0x18] sm:$0xff] %v698
        %715 = vst [vmem:[%s213 + $0x20] sm:$0xff] %v699
        %716 = vst [vmem:[%s213 + $0x28] sm:$0xff] %v700
        %717 = vst [vmem:[%s213 + $0x30] sm:$0xff] %v701
        %718 = vst [vmem:[%s213 + $0x38] sm:$0xff] %v702
        %719 = vst [vmem:[%s213 + $0x40] sm:$0xff] %v703
        %720 = vst [vmem:[%s213 + $0x48] sm:$0xff] %v704
        %721 = vst [vmem:[%s213 + $0x50] sm:$0xff] %v705
        %722 = vst [vmem:[%s213 + $0x58] sm:$0xff] %v706
        %723 = vst [vmem:[%s213 + $0x60] sm:$0xff] %v707
        %724 = vst [vmem:[%s213 + $0x68] sm:$0xff] %v708
        %725 = vst [vmem:[%s213 + $0x70] sm:$0xff] %v709
        %726 = vst [vmem:[%s213 + $0x78] sm:$0xff] %v710
        %s727 = sand.u32 %s86, 1
        %s728 = scalar_lea.sflag [#allocation4], %s727
        %s729 = sand.u32 %s86, 1
        %s730 = smul.addr %s729, 128
        %s731 = scalar_lea.vmem [#allocation7], %s730
        // Predicated region
        $region37: #{tpu_custom_call.1} parent=27 // pred_check
          %p732 = pneg %p96
        $region38: #{tpu_custom_call.1} parent=27 // pred_check_branch
          %734 = sbr.rel (%p732) target = $region40
        $region39: #{tpu_custom_call.1} parent=27 // pred_region
          %s735 = smul.u32 8, %s22
          %s737 = ssub.s32 2048, 2048
          %738 = vsyncadd %s728, %s737
          %s739 = smul.addr %s735, 2
          %s740 = smul.addr %s739, 128
          %s741 = scalar_lea.hbm %s2, %s740
          %s742 = sshll.u32 %s731, 4
          %s743 = int_to_ptr.vmem [resolvable:$true] %s742
          %748 = dma.vmem_to_hbm [thread:$0]  %s743, 2048, %s741, %s728, 256, 256, 16
        $region40: #{tpu_custom_call.1} parent=27 // pred_fallthru
          _
      $region28: #{tpu_custom_call.1} parent=5 // pred_fallthru
        _
      %p749 = scmp.le.s32.totalorder 2, %s17
      // Predicated region
      $region41: #{tpu_custom_call.1} parent=5 // pred_check
        %p750 = pneg %p749
      $region42: #{tpu_custom_call.1} parent=5 // pred_check_branch
        %752 = sbr.rel (%p750) target = $region44
      $region43: #{tpu_custom_call.1} parent=5 // pred_region
        %s753 = ssub.s32 %s17, 2
        // Predicated region
        $region45: #{tpu_custom_call.1} parent=43 // pred_check
          %p754 = pneg %p102
        $region46: #{tpu_custom_call.1} parent=43 // pred_check_branch
          %756 = sbr.rel (%p754) target = $region48
        $region47: #{tpu_custom_call.1} parent=43 // pred_region
          %s757 = sand.u32 %s87, 1
          %s758 = scalar_lea.sflag [#allocation4], %s757
          %s759 = sand.u32 %s87, 1
          %s760 = smul.addr %s759, 128
          %s761 = scalar_lea.vmem [#allocation7], %s760
          %762 = dma.done %s758, 2048
        $region48: #{tpu_custom_call.1} parent=43 // pred_fallthru
          _
      $region44: #{tpu_custom_call.1} parent=5 // pred_fallthru
        _
    $region6: #{tpu_custom_call.1} parent=1 // loop_footer
      %s21 = sadd.s32 1, %s17
    $region7: #{tpu_custom_call.1} parent=1 // loop_footer_branch
      %16 = sbr.rel target = $region3
    $region8: #{tpu_custom_call.1} parent=1 // loop_exit
      _
    %763 = vsyncpa [#allocation3], 1
    %s764 = scalar_lea.sflag [#allocation3], 1
    %765 = vsyncpa %s764, 1
    %766 = vsyncpa [#allocation6], 1
    %s767 = scalar_lea.sflag [#allocation6], 1
    %768 = vsyncpa %s767, 1
    %769 = vsyncpa [#allocation4], 1
    %s770 = scalar_lea.sflag [#allocation4], 1
    %771 = vsyncpa %s770, 1

</llo_original>
